<compile_context>
chip_gen: v7x
topology: tpu7x:2x2x1
jax: 0.10.0
libtpu: 0.0.40
codegen_flags: <defaults>
</compile_context>

<pallas_src>
import jax
import jax.numpy as jnp
from jax.experimental import pallas as pl
from jax.experimental.pallas import tpu as pltpu


def mlp_kernel(x_ref, w1_ref, b1_ref, w2_ref, b2_ref, o_ref):
    # Linear 1: bf16 inputs on the MXU, f32 accumulate.
    x = x_ref[...].astype(jnp.bfloat16)
    h = jnp.dot(x, w1_ref[...], preferred_element_type=jnp.float32)
    # Bias + ReLU epilogue in f32 on the VPU (portable to v5e: no bf16 VALU).
    h = jnp.maximum(h + b1_ref[...], 0.0)
    # Linear 2 (dominant matmul, K=512 / N=512, lane-dense): bf16 on the MXU.
    out = jnp.dot(h.astype(jnp.bfloat16), w2_ref[...],
                  preferred_element_type=jnp.float32)
    o_ref[...] = (out + b2_ref[...]).astype(o_ref.dtype)


def prepare_params(w1, b1, w2, b2):
    """Pad hidden dim 400 -> 512 with zeros and pre-cast matmul weights to bf16.

    w1: (D_in, 400); b1: (400,); w2: (400, 512); b2: (512,).
    Zero padding is numerically exact: relu(0 + 0) hits zero rows of padded w2,
    so the padded hidden columns contribute nothing.
    """
    h1 = w1.shape[1]
    h1_pad = ((h1 + 127) // 128) * 128          # 400 -> 512
    pad = h1_pad - h1
    w1p = jnp.pad(w1, ((0, 0), (0, pad))).astype(jnp.bfloat16)
    b1p = jnp.pad(b1, ((0, pad),)).astype(jnp.float32).reshape(1, h1_pad)
    w2p = jnp.pad(w2, ((0, pad), (0, 0))).astype(jnp.bfloat16)
    b2p = b2.astype(jnp.float32).reshape(1, -1)
    return w1p, b1p, w2p, b2p


def _cost_estimate(batch, d_in, h1_pad, h2, out_bytes=4):
    flops = 2 * batch * (d_in * h1_pad + h1_pad * h2)
    bytes_accessed = (batch * d_in * 4            # x (f32)
                      + d_in * h1_pad * 2         # w1 (bf16)
                      + h1_pad * 4                # b1 (f32)
                      + h1_pad * h2 * 2           # w2 (bf16)
                      + h2 * 4                    # b2 (f32)
                      + batch * h2 * out_bytes)   # out
    return pl.CostEstimate(flops=flops, transcendentals=0,
                           bytes_accessed=bytes_accessed)


def _pick_tm(batch, tm_max=1024):
    """Generation-aware batch tile.

    tm_max=1024 keeps the per-step working set (~9 MiB with f32 outputs,
    double-buffered x/out tiles + f32/bf16 hidden + resident weights) under the
    default scoped-VMEM limit on every generation (v5e 16 MiB, v6e/v7x 32 MiB).
    For mid-size batches we split into at least 2 grid steps so v7x's second
    TensorCore gets work via the 'parallel' batch axis.
    """
    if batch <= 256:
        tm = batch                       # tiny: single step, splitting buys nothing
    elif batch <= 2 * tm_max:
        tm = (batch + 1) // 2            # >= 2 steps for megacore / v7x
    else:
        tm = tm_max
    return max(8, ((tm + 7) // 8) * 8)   # sublane (8) alignment


def flat_model_forward(x, w1p, b1p, w2p, b2p, *, out_dtype=None):
    """Small-batch path: no grid, whole operands as single VMEM blocks.

    Launch/DMA-latency bound at tiny batch; amortize at the call site
    (batch requests together, or cross-call weight prefetch) if it matters.
    """
    batch, d_in = x.shape
    h1_pad = w1p.shape[1]
    h2 = w2p.shape[1]
    if out_dtype is None:
        out_dtype = x.dtype
    vmem = lambda: pl.BlockSpec(memory_space=pltpu.MemorySpace.VMEM)
    return pl.pallas_call(
        mlp_kernel,
        out_shape=jax.ShapeDtypeStruct((batch, h2), out_dtype),
        in_specs=[vmem(), vmem(), vmem(), vmem(), vmem()],
        out_specs=vmem(),
        cost_estimate=_cost_estimate(batch, d_in, h1_pad, h2,
                                     out_bytes=jnp.dtype(out_dtype).itemsize),
    )(x, w1p, b1p, w2p, b2p)


def flat_model_forward_batched(x, w1p, b1p, w2p, b2p, *, tm=None, out_dtype=None):
    """Many-request path: tile the batch with a large tile, weights VMEM-resident.

    * Weights/biases use constant index_maps so they are fetched once and stay
      in VMEM across all grid steps.
    * grid = cdiv(batch, tm): no wrapper-side pad of x and no out[:batch] slice;
      Pallas masks the writeback of the partial last block, and garbage OOB
      input rows are row-independent so they never contaminate valid rows.
    * 'parallel' batch axis shards grid steps across v7x's two TensorCores.
    """
    batch, d_in = x.shape
    h1_pad = w1p.shape[1]
    h2 = w2p.shape[1]
    if out_dtype is None:
        out_dtype = x.dtype
    if tm is None:
        tm = _pick_tm(batch)
    tm = max(8, ((min(tm, batch) + 7) // 8) * 8)
    grid = ((batch + tm - 1) // tm,)
    return pl.pallas_call(
        mlp_kernel,
        out_shape=jax.ShapeDtypeStruct((batch, h2), out_dtype),
        grid_spec=pltpu.PrefetchScalarGridSpec(
            num_scalar_prefetch=0,
            grid=grid,
            in_specs=[
                pl.BlockSpec((tm, d_in), lambda i: (i, 0)),
                pl.BlockSpec((d_in, h1_pad), lambda i: (0, 0)),  # VMEM-resident
                pl.BlockSpec((1, h1_pad), lambda i: (0, 0)),     # VMEM-resident
                pl.BlockSpec((h1_pad, h2), lambda i: (0, 0)),    # VMEM-resident
                pl.BlockSpec((1, h2), lambda i: (0, 0)),         # VMEM-resident
            ],
            out_specs=pl.BlockSpec((tm, h2), lambda i: (i, 0)),
        ),
        compiler_params=pltpu.CompilerParams(
            dimension_semantics=("parallel",),
            vmem_limit_bytes=32 * 1024 * 1024,
        ),
        cost_estimate=_cost_estimate(batch, d_in, h1_pad, h2,
                                     out_bytes=jnp.dtype(out_dtype).itemsize),
    )(x, w1p, b1p, w2p, b2p)


def init_params(key, input_size, dtype=jnp.float32):
    """Deterministic init mimicking PyTorch nn.Linear default U(-1/sqrt(fan_in), +)."""
    k1, k2, k3, k4 = jax.random.split(key, 4)
    h1, h2 = 400, 512
    bound1 = 1.0 / (input_size ** 0.5)
    bound2 = 1.0 / (h1 ** 0.5)
    w1 = jax.random.uniform(k1, (input_size, h1), dtype, -bound1, bound1)
    b1 = jax.random.uniform(k2, (h1,), dtype, -bound1, bound1)
    w2 = jax.random.uniform(k3, (h1, h2), dtype, -bound2, bound2)
    b2 = jax.random.uniform(k4, (h2,), dtype, -bound2, bound2)
    return w1, b1, w2, b2


if __name__ == "__main__":
    key = jax.random.PRNGKey(0)
    kx, kp, kb = jax.random.split(key, 3)

    batch = 8
    input_size = 32
    x = jax.random.normal(kx, (batch, input_size), jnp.float32)
    w1, b1, w2, b2 = init_params(kp, input_size)
    w1p, b1p, w2p, b2p = prepare_params(w1, b1, w2, b2)

    # Reference with matching bf16 matmul inputs / f32 accumulation.
    def ref_fwd(xx):
        h = jnp.dot(xx.astype(jnp.bfloat16), w1.astype(jnp.bfloat16),
                    preferred_element_type=jnp.float32) + b1
        h = jnp.maximum(h, 0.0)
        return jnp.dot(h.astype(jnp.bfloat16), w2.astype(jnp.bfloat16),
                       preferred_element_type=jnp.float32) + b2

    # --- small-batch (no-grid) path ---
    out = jax.block_until_ready(flat_model_forward(x, w1p, b1p, w2p, b2p))
    ref_bf16 = ref_fwd(x)
    ref_f32 = jnp.maximum(x @ w1 + b1, 0.0) @ w2 + b2
    assert out.shape == (batch, 512), out.shape
    assert jnp.allclose(out, ref_bf16, atol=2e-2, rtol=2e-2), "mismatch vs bf16 ref"
    assert jnp.allclose(out, ref_f32, atol=1e-1, rtol=1e-1), "mismatch vs f32 ref"

    # --- batched path: auto-picked large tile, batch not a tile multiple ---
    big_batch = 300
    xb = jax.random.normal(kb, (big_batch, input_size), jnp.float32)
    refb = ref_fwd(xb)

    outb = jax.block_until_ready(flat_model_forward_batched(xb, w1p, b1p, w2p, b2p))
    assert outb.shape == (big_batch, 512), outb.shape
    assert jnp.allclose(outb, refb, atol=2e-2, rtol=2e-2), "mismatch (batched, auto tm)"

    # --- batched path: explicit small tile -> multi-step grid + partial last block ---
    outb2 = jax.block_until_ready(
        flat_model_forward_batched(xb, w1p, b1p, w2p, b2p, tm=128))
    assert jnp.allclose(outb2, refb, atol=2e-2, rtol=2e-2), "mismatch (batched, tm=128)"

    # --- batched path: bf16 output (memory-bound path on v6e/v7x) ---
    outb16 = jax.block_until_ready(
        flat_model_forward_batched(xb, w1p, b1p, w2p, b2p, out_dtype=jnp.bfloat16))
    assert outb16.dtype == jnp.bfloat16
    assert jnp.allclose(outb16.astype(jnp.float32), refb, atol=5e-2, rtol=5e-2), \
        "mismatch (batched, bf16 out)"

    print("KERNEL_OK")
</pallas_src>

<mosaic_0001>
module attributes {stable_mosaic.version = 11 : i64} {
  func.func @mlp_kernel(%arg0: memref<8x32xf32, #tpu.memory_space<vmem>>, %arg1: memref<32x512xbf16, #tpu.memory_space<vmem>>, %arg2: memref<1x512xf32, #tpu.memory_space<vmem>>, %arg3: memref<512x512xbf16, #tpu.memory_space<vmem>>, %arg4: memref<1x512xf32, #tpu.memory_space<vmem>>, %arg5: memref<8x512xf32, #tpu.memory_space<vmem>>) attributes {dimension_semantics = [], scalar_prefetch = 0 : i64, scratch_operands = 0 : i64, tpu.core_type = #tpu.core_type<tc>} {
    %c0 = arith.constant 0 : index
    %c0_0 = arith.constant 0 : index
    %0 = vector.load %arg0[%c0, %c0_0] : memref<8x32xf32, #tpu.memory_space<vmem>>, vector<8x32xf32>
    %1 = arith.truncf %0 : vector<8x32xf32> to vector<8x32xbf16>
    %c0_1 = arith.constant 0 : index
    %c0_2 = arith.constant 0 : index
    %2 = vector.load %arg1[%c0_1, %c0_2] : memref<32x512xbf16, #tpu.memory_space<vmem>>, vector<32x512xbf16>
    %cst = arith.constant dense<0.000000e+00> : vector<8x512xf32>
    %3 = tpu.matmul %1, %2, %cst {dimension_numbers = #tpu.dot_dimension_numbers<[1], [0], [0], [1], [0, 0, 1, 1], [], []>} : vector<8x32xbf16>, vector<32x512xbf16>, vector<8x512xf32> -> vector<8x512xf32>
    %c0_3 = arith.constant 0 : index
    %c0_4 = arith.constant 0 : index
    %4 = vector.load %arg2[%c0_3, %c0_4] : memref<1x512xf32, #tpu.memory_space<vmem>>, vector<1x512xf32>
    %5 = vector.broadcast %4 : vector<1x512xf32> to vector<8x512xf32>
    %6 = arith.addf %3, %5 : vector<8x512xf32>
    %cst_5 = arith.constant 0.000000e+00 : f32
    %7 = vector.broadcast %cst_5 : f32 to vector<8x512xf32>
    %8 = arith.maximumf %6, %7 : vector<8x512xf32>
    %9 = arith.truncf %8 : vector<8x512xf32> to vector<8x512xbf16>
    %c0_6 = arith.constant 0 : index
    %c0_7 = arith.constant 0 : index
    %10 = vector.load %arg3[%c0_6, %c0_7] : memref<512x512xbf16, #tpu.memory_space<vmem>>, vector<512x512xbf16>
    %cst_8 = arith.constant dense<0.000000e+00> : vector<8x512xf32>
    %11 = tpu.matmul %9, %10, %cst_8 {dimension_numbers = #tpu.dot_dimension_numbers<[1], [0], [0], [1], [0, 0, 1, 1], [], []>} : vector<8x512xbf16>, vector<512x512xbf16>, vector<8x512xf32> -> vector<8x512xf32>
    %c0_9 = arith.constant 0 : index
    %c0_10 = arith.constant 0 : index
    %12 = vector.load %arg4[%c0_9, %c0_10] : memref<1x512xf32, #tpu.memory_space<vmem>>, vector<1x512xf32>
    %13 = vector.broadcast %12 : vector<1x512xf32> to vector<8x512xf32>
    %14 = arith.addf %11, %13 : vector<8x512xf32>
    %c0_11 = arith.constant 0 : index
    %c0_12 = arith.constant 0 : index
    %15 = vector.load %arg5[%c0_11, %c0_12] : memref<8x512xf32, #tpu.memory_space<vmem>>, vector<8x512xf32>
    tpu.vector_store %arg5[%c0_11, %c0_12], %14 {strides = array<i32>} : memref<8x512xf32, #tpu.memory_space<vmem>>, vector<8x512xf32>,
    return
  }
}

</mosaic_0001>

<llo_original>
// kernel: tpu_custom_call.1
$region0: #{tpu_custom_call.1}
  #allocation0 [shape = 'u32[]', space=smem, size = 0x4, offset = 0x4, fixed_abs, tag = 'smem constant byte address 0x4 - core index']
  #allocation1 [shape = 'u32[144,128]{1,0:T(1,128)}', space=vmem, size = 0x12000, scoped, tag = 'internal scratch']
  %s0 = inlined_call_operand.hbm [shape: f32[8,32], index: 0, kind: input, shape index: {}]
  %s1 = inlined_call_operand.hbm [shape: bf16[32,512], index: 1, kind: input, shape index: {}]
  %s2 = inlined_call_operand.vmem [shape: f32[1,512], index: 2, kind: input, shape index: {}]
  %s3 = inlined_call_operand.hbm [shape: bf16[512,512], index: 3, kind: input, shape index: {}]
  %s4 = inlined_call_operand.vmem [shape: f32[1,512], index: 4, kind: input, shape index: {}]
  %s5 = inlined_call_operand.hbm [shape: f32[8,512], index: 5, kind: output, shape index: {}]
  %s6 = sld [smem:[#allocation0]]
  $region42: #{tpu_custom_call.1} parent=0
    _
  %s8 = ssub.s32 1, %s6
  %s9 = scalar_select 0, %s8, %s6
  $region1: #{tpu_custom_call.1} parent=0
    #allocation2 [shape = 'u8[4096]{0}', space=vmem, size = 0x1000, scoped, tag = 'input window, operand 0, single buffered']
    #allocation3 [shape = 's32[1]{0}', space=sflag, size = 0x4, scoped, tag = 'scoped memory for tpu_custom_call.1']
    #allocation4 [shape = 's32[1]{0}', space=sflag, size = 0x4, scoped, tag = 'scoped memory for tpu_custom_call.1']
    #allocation5 [shape = 'u8[32768]{0}', space=vmem, size = 0x8000, scoped, tag = 'input window, operand 1, single buffered']
    #allocation6 [shape = 's32[1]{0}', space=sflag, size = 0x4, scoped, tag = 'scoped memory for tpu_custom_call.1']
    #allocation7 [shape = 'u8[524288]{0}', space=vmem, size = 0x80000, scoped, tag = 'input window, operand 3, single buffered']
    #allocation8 [shape = 'u8[16384]{0}', space=vmem, size = 0x4000, scoped, tag = 'output window, operand 0, single buffered']
    %10 = vsyncpa [#allocation3], 0
    %11 = vsyncpa [#allocation6], 0
    %12 = vsyncpa [#allocation4], 0
    // Predicated region
    $region2: #{tpu_custom_call.1} parent=1 // pred_check
      _
    $region3: #{tpu_custom_call.1} parent=1 // pred_check_branch
      %14 = sbr.rel (0) target = $region5
    $region4: #{tpu_custom_call.1} parent=1 // pred_region
      %s16 = ssub.s32 128, 128
      %17 = vsyncadd [#allocation3], %s16
      %s19 = sshll.u32 [#allocation2], 4
      %s20 = int_to_ptr.vmem [resolvable:$true] %s19
      %22 = dma.hbm_to_vmem [thread:$0]  %s0, 128, %s20, [#allocation3]
    $region5: #{tpu_custom_call.1} parent=1 // pred_fallthru
      _
    // Predicated region
    $region6: #{tpu_custom_call.1} parent=1 // pred_check
      _
    $region7: #{tpu_custom_call.1} parent=1 // pred_check_branch
      %24 = sbr.rel (0) target = $region9
    $region8: #{tpu_custom_call.1} parent=1 // pred_region
      %s26 = ssub.s32 1024, 1024
      %27 = vsyncadd [#allocation6], %s26
      %s28 = sshll.u32 [#allocation5], 4
      %s29 = int_to_ptr.vmem [resolvable:$true] %s28
      %34 = dma.hbm_to_vmem [thread:$0]  %s1, 1024, %s29, [#allocation6], 256, 256, 16
    $region9: #{tpu_custom_call.1} parent=1 // pred_fallthru
      _
    // Predicated region
    $region10: #{tpu_custom_call.1} parent=1 // pred_check
      _
    $region11: #{tpu_custom_call.1} parent=1 // pred_check_branch
      %36 = sbr.rel (0) target = $region13
    $region12: #{tpu_custom_call.1} parent=1 // pred_region
      _
    $region13: #{tpu_custom_call.1} parent=1 // pred_fallthru
      _
    // Predicated region
    $region14: #{tpu_custom_call.1} parent=1 // pred_check
      _
    $region15: #{tpu_custom_call.1} parent=1 // pred_check_branch
      %38 = sbr.rel (0) target = $region17
    $region16: #{tpu_custom_call.1} parent=1 // pred_region
      %s40 = ssub.s32 16384, 16384
      %41 = vsyncadd [#allocation6], %s40
      %s42 = sshll.u32 [#allocation7], 4
      %s43 = int_to_ptr.vmem [resolvable:$true] %s42
      %48 = dma.hbm_to_vmem [thread:$0]  %s3, 16384, %s43, [#allocation6], 256, 256, 16
    $region17: #{tpu_custom_call.1} parent=1 // pred_fallthru
      _
    // Predicated region
    $region18: #{tpu_custom_call.1} parent=1 // pred_check
      _
    $region19: #{tpu_custom_call.1} parent=1 // pred_check_branch
      %50 = sbr.rel (0) target = $region21
    $region20: #{tpu_custom_call.1} parent=1 // pred_region
      _
    $region21: #{tpu_custom_call.1} parent=1 // pred_fallthru
      _
    // Predicated region
    $region22: #{tpu_custom_call.1} parent=1 // pred_check
      _
    $region23: #{tpu_custom_call.1} parent=1 // pred_check_branch
      %52 = sbr.rel (0) target = $region25
    $region24: #{tpu_custom_call.1} parent=1 // pred_region
      %53 = dma.done [#allocation3], 128
    $region25: #{tpu_custom_call.1} parent=1 // pred_fallthru
      _
    // Predicated region
    $region26: #{tpu_custom_call.1} parent=1 // pred_check
      _
    $region27: #{tpu_custom_call.1} parent=1 // pred_check_branch
      %55 = sbr.rel (0) target = $region29
    $region28: #{tpu_custom_call.1} parent=1 // pred_region
      %56 = dma.done [#allocation6], 1024
    $region29: #{tpu_custom_call.1} parent=1 // pred_fallthru
      _
    // Predicated region
    $region30: #{tpu_custom_call.1} parent=1 // pred_check
      _
    $region31: #{tpu_custom_call.1} parent=1 // pred_check_branch
      %58 = sbr.rel (0) target = $region33
    $region32: #{tpu_custom_call.1} parent=1 // pred_region
      %59 = dma.done [#allocation6], 16384
    $region33: #{tpu_custom_call.1} parent=1 // pred_fallthru
      _
    %v61 = vld [vmem:[#allocation2] sm:$0xff]
    %v62 = vpack.c.bf16 %v61, %v61
    %v63 = vld [vmem:[#allocation5] sm:$0xff]
    %v64 = vld [vmem:[#allocation5 + $0x8] sm:$0xff]
    %v65 = vld [vmem:[#allocation5 + $0x10] sm:$0xff]
    %v66 = vld [vmem:[#allocation5 + $0x18] sm:$0xff]
    %v67 = vld [vmem:[#allocation5 + $0x20] sm:$0xff]
    %v68 = vld [vmem:[#allocation5 + $0x28] sm:$0xff]
    %v69 = vld [vmem:[#allocation5 + $0x30] sm:$0xff]
    %v70 = vld [vmem:[#allocation5 + $0x38] sm:$0xff]
    %v71 = vld [vmem:[%s2] sm:$0xf]
    %v73 = vlaneseq
    %v74 = vshrl.u32 %v73, 7
    %v75 = vsub.s32 0, %v74
    %v76 = vrot.slane %v71, %v75
    %v77 = vlaneseq
    %v78 = vshrl.u32 %v77, 7
    %v79 = vsub.s32 1, %v78
    %v80 = vrot.slane %v71, %v79
    %v81 = vlaneseq
    %v82 = vshrl.u32 %v81, 7
    %v83 = vsub.s32 2, %v82
    %v84 = vrot.slane %v71, %v83
    %v85 = vlaneseq
    %v86 = vshrl.u32 %v85, 7
    %v87 = vsub.s32 3, %v86
    %v88 = vrot.slane %v71, %v87
    %v101 = vunpack.c.l.b16 %v63
    %v102 = vunpack.c.h.b16 %v63
    %v103 = vunpack.c.l.b16 %v64
    %v104 = vunpack.c.h.b16 %v64
    %v105 = vunpack.c.l.b16 %v65
    %v106 = vunpack.c.h.b16 %v65
    %v107 = vunpack.c.l.b16 %v66
    %v108 = vunpack.c.h.b16 %v66
    %v109 = vunpack.c.l.b16 %v67
    %v110 = vunpack.c.h.b16 %v67
    %v111 = vunpack.c.l.b16 %v68
    %v112 = vunpack.c.h.b16 %v68
    %v113 = vunpack.c.l.b16 %v69
    %v114 = vunpack.c.h.b16 %v69
    %v115 = vunpack.c.l.b16 %v70
    %v116 = vunpack.c.h.b16 %v70
    %v117 = vpack.c.b16 %v105, %v101
    %v118 = vpack.c.b16 %v106, %v102
    %v119 = vpack.c.b16 %v107, %v103
    %v120 = vpack.c.b16 %v108, %v104
    %v121 = vpack.c.b16 %v113, %v109
    %v122 = vpack.c.b16 %v114, %v110
    %v123 = vpack.c.b16 %v115, %v111
    %v124 = vpack.c.b16 %v116, %v112
    %vm133 = vcmask 261120
    %v135 = vsel %vm133, %v62, 0
    %137 = vmatprep.subr.bf16.mxu0 %v118
    %138 = vmatpush1.bf16.msra.mxu0 %v117
    %139 = vmatprep.subr.bf16.mxu0 %v122
    %140 = vmatpush1.bf16.msra.mxu0 %v121
    %141 = vmatprep.subr.bf16.mxu0 0
    %142 = vmatpush1.bf16.msra.mxu0 0
    %143 = vmatprep.subr.bf16.mxu0 0
    %144 = vmatpush1.bf16.msra.mxu0 0
    %145 = vmatprep.subr.bf16.mxu0 0
    %146 = vmatpush1.bf16.msra.mxu0 0
    %147 = vmatprep.subr.bf16.mxu0 0
    %148 = vmatpush1.bf16.msra.mxu0 0
    %149 = vmatprep.subr.bf16.mxu0 0
    %150 = vmatpush1.bf16.msra.mxu0 0
    %151 = vmatprep.subr.bf16.mxu0 0
    %152 = vmatpush1.bf16.msra.mxu0 0
    %153 = vmatprep.subr.bf16.mxu0 0
    %154 = vmatpush1.bf16.msra.mxu0 0
    %155 = vmatprep.subr.bf16.mxu0 0
    %156 = vmatpush1.bf16.msra.mxu0 0
    %157 = vmatprep.subr.bf16.mxu0 0
    %158 = vmatpush1.bf16.msra.mxu0 0
    %159 = vmatprep.subr.bf16.mxu0 0
    %160 = vmatpush1.bf16.msra.mxu0 0
    %161 = vmatprep.subr.bf16.mxu0 0
    %162 = vmatpush1.bf16.msra.mxu0 0
    %163 = vmatprep.subr.bf16.mxu0 0
    %164 = vmatpush1.bf16.msra.mxu0 0
    %165 = vmatprep.subr.bf16.mxu0 0
    %166 = vmatpush1.bf16.msra.mxu0 0
    %167 = vmatprep.subr.bf16.mxu0 0
    %168 = vmatpush1.bf16.msra.mxu0 0
    %169 = vmatprep.mubr.bf16.mxu0 0
    %170 = vmatmul.mubr.bf16.gmra.mrb[0].mxu0 %v135
    %v171 = vpop.f32.mrb[0].mxu0
    %v172 = vadd.f32 %v76, %v171
    %v173 = vpop.f32.mrb[0].mxu0
    %v174 = vadd.f32 %v80, %v173
    %v175 = vpop.f32.mrb[0].mxu0
    %v176 = vpop.f32.mrb[0].mxu0
    %177 = vdwg.mxu0
    %178 = vmatprep.subr.bf16.mxu0 %v120
    %179 = vmatpush1.bf16.msra.mxu0 %v119
    %180 = vmatprep.subr.bf16.mxu0 %v124
    %181 = vmatpush1.bf16.msra.mxu0 %v123
    %182 = vmatprep.subr.bf16.mxu0 0
    %183 = vmatpush1.bf16.msra.mxu0 0
    %184 = vmatprep.subr.bf16.mxu0 0
    %185 = vmatpush1.bf16.msra.mxu0 0
    %186 = vmatprep.subr.bf16.mxu0 0
    %187 = vmatpush1.bf16.msra.mxu0 0
    %188 = vmatprep.subr.bf16.mxu0 0
    %189 = vmatpush1.bf16.msra.mxu0 0
    %190 = vmatprep.subr.bf16.mxu0 0
    %191 = vmatpush1.bf16.msra.mxu0 0
    %192 = vmatprep.subr.bf16.mxu0 0
    %193 = vmatpush1.bf16.msra.mxu0 0
    %194 = vmatprep.subr.bf16.mxu0 0
    %195 = vmatpush1.bf16.msra.mxu0 0
    %196 = vmatprep.subr.bf16.mxu0 0
    %197 = vmatpush1.bf16.msra.mxu0 0
    %198 = vmatprep.subr.bf16.mxu0 0
    %199 = vmatpush1.bf16.msra.mxu0 0
    %200 = vmatprep.subr.bf16.mxu0 0
    %201 = vmatpush1.bf16.msra.mxu0 0
    %202 = vmatprep.subr.bf16.mxu0 0
    %203 = vmatpush1.bf16.msra.mxu0 0
    %204 = vmatprep.subr.bf16.mxu0 0
    %205 = vmatpush1.bf16.msra.mxu0 0
    %206 = vmatprep.subr.bf16.mxu0 0
    %207 = vmatpush1.bf16.msra.mxu0 0
    %208 = vmatprep.subr.bf16.mxu0 0
    %209 = vmatpush1.bf16.msra.mxu0 0
    %210 = vmatprep.mubr.bf16.mxu0 0
    %211 = vmatmul.mubr.bf16.gmra.mrb[0].mxu0 %v135
    %v212 = vpop.f32.mrb[0].mxu0
    %v213 = vadd.f32 %v84, %v212
    %v214 = vpop.f32.mrb[0].mxu0
    %v215 = vadd.f32 %v88, %v214
    %v216 = vpop.f32.mrb[0].mxu0
    %v217 = vpop.f32.mrb[0].mxu0
    %218 = vdwg.mxu0
    %v219 = vmax.f32 %v172, 0.0
    %v220 = vmax.f32 %v174, 0.0
    %v221 = vmax.f32 %v213, 0.0
    %v222 = vmax.f32 %v215, 0.0
    %v223 = vpack.c.bf16 %v219, %v219
    %v224 = vpack.c.bf16 %v220, %v220
    %v225 = vpack.c.bf16 %v221, %v221
    %v226 = vpack.c.bf16 %v222, %v222
    %v227 = vld [vmem:[#allocation7] sm:$0xff]
    %v228 = vld [vmem:[#allocation7 + $0x8] sm:$0xff]
    %v229 = vld [vmem:[#allocation7 + $0x10] sm:$0xff]
    %v230 = vld [vmem:[#allocation7 + $0x18] sm:$0xff]
    %v231 = vld [vmem:[#allocation7 + $0x20] sm:$0xff]
    %v232 = vld [vmem:[#allocation7 + $0x28] sm:$0xff]
    %v233 = vld [vmem:[#allocation7 + $0x30] sm:$0xff]
    %v234 = vld [vmem:[#allocation7 + $0x38] sm:$0xff]
    %v235 = vld [vmem:[#allocation7 + $0x40] sm:$0xff]
    %v236 = vld [vmem:[#allocation7 + $0x48] sm:$0xff]
    %v237 = vld [vmem:[#allocation7 + $0x50] sm:$0xff]
    %v238 = vld [vmem:[#allocation7 + $0x58] sm:$0xff]
    %v239 = vld [vmem:[#allocation7 + $0x60] sm:$0xff]
    %v240 = vld [vmem:[#allocation7 + $0x68] sm:$0xff]
    %v241 = vld [vmem:[#allocation7 + $0x70] sm:$0xff]
    %v242 = vld [vmem:[#allocation7 + $0x78] sm:$0xff]
    %v243 = vld [vmem:[#allocation7 + $0x80] sm:$0xff]
    %v244 = vld [vmem:[#allocation7 + $0x88] sm:$0xff]
    %v245 = vld [vmem:[#allocation7 + $0x90] sm:$0xff]
    %v246 = vld [vmem:[#allocation7 + $0x98] sm:$0xff]
    %v247 = vld [vmem:[#allocation7 + $0xa0] sm:$0xff]
    %v248 = vld [vmem:[#allocation7 + $0xa8] sm:$0xff]
    %v249 = vld [vmem:[#allocation7 + $0xb0] sm:$0xff]
    %v250 = vld [vmem:[#allocation7 + $0xb8] sm:$0xff]
    %v251 = vld [vmem:[#allocation7 + $0xc0] sm:$0xff]
    %v252 = vld [vmem:[#allocation7 + $0xc8] sm:$0xff]
    %v253 = vld [vmem:[#allocation7 + $0xd0] sm:$0xff]
    %v254 = vld [vmem:[#allocation7 + $0xd8] sm:$0xff]
    %v255 = vld [vmem:[#allocation7 + $0xe0] sm:$0xff]
    %v256 = vld [vmem:[#allocation7 + $0xe8] sm:$0xff]
    %v257 = vld [vmem:[#allocation7 + $0xf0] sm:$0xff]
    %v258 = vld [vmem:[#allocation7 + $0xf8] sm:$0xff]
    %v259 = vld [vmem:[#allocation7 + $0x100] sm:$0xff]
    %v260 = vld [vmem:[#allocation7 + $0x108] sm:$0xff]
    %v261 = vld [vmem:[#allocation7 + $0x110] sm:$0xff]
    %v262 = vld [vmem:[#allocation7 + $0x118] sm:$0xff]
    %v263 = vld [vmem:[#allocation7 + $0x120] sm:$0xff]
    %v264 = vld [vmem:[#allocation7 + $0x128] sm:$0xff]
    %v265 = vld [vmem:[#allocation7 + $0x130] sm:$0xff]
    %v266 = vld [vmem:[#allocation7 + $0x138] sm:$0xff]
    %v267 = vld [vmem:[#allocation7 + $0x140] sm:$0xff]
    %v268 = vld [vmem:[#allocation7 + $0x148] sm:$0xff]
    %v269 = vld [vmem:[#allocation7 + $0x150] sm:$0xff]
    %v270 = vld [vmem:[#allocation7 + $0x158] sm:$0xff]
    %v271 = vld [vmem:[#allocation7 + $0x160] sm:$0xff]
    %v272 = vld [vmem:[#allocation7 + $0x168] sm:$0xff]
    %v273 = vld [vmem:[#allocation7 + $0x170] sm:$0xff]
    %v274 = vld [vmem:[#allocation7 + $0x178] sm:$0xff]
    %v275 = vld [vmem:[#allocation7 + $0x180] sm:$0xff]
    %v276 = vld [vmem:[#allocation7 + $0x188] sm:$0xff]
    %v277 = vld [vmem:[#allocation7 + $0x190] sm:$0xff]
    %v278 = vld [vmem:[#allocation7 + $0x198] sm:$0xff]
    %v279 = vld [vmem:[#allocation7 + $0x1a0] sm:$0xff]
    %v280 = vld [vmem:[#allocation7 + $0x1a8] sm:$0xff]
    %v281 = vld [vmem:[#allocation7 + $0x1b0] sm:$0xff]
    %v282 = vld [vmem:[#allocation7 + $0x1b8] sm:$0xff]
    %v283 = vld [vmem:[#allocation7 + $0x1c0] sm:$0xff]
    %v284 = vld [vmem:[#allocation7 + $0x1c8] sm:$0xff]
    %v285 = vld [vmem:[#allocation7 + $0x1d0] sm:$0xff]
    %v286 = vld [vmem:[#allocation7 + $0x1d8] sm:$0xff]
    %v287 = vld [vmem:[#allocation7 + $0x1e0] sm:$0xff]
    %v288 = vld [vmem:[#allocation7 + $0x1e8] sm:$0xff]
    %v289 = vld [vmem:[#allocation7 + $0x1f0] sm:$0xff]
    %v290 = vld [vmem:[#allocation7 + $0x1f8] sm:$0xff]
    %v291 = vld [vmem:[#allocation7 + $0x200] sm:$0xff]
    %v292 = vld [vmem:[#allocation7 + $0x208] sm:$0xff]
    %v293 = vld [vmem:[#allocation7 + $0x210] sm:$0xff]
    %v294 = vld [vmem:[#allocation7 + $0x218] sm:$0xff]
    %v295 = vld [vmem:[#allocation7 + $0x220] sm:$0xff]
    %v296 = vld [vmem:[#allocation7 + $0x228] sm:$0xff]
    %v297 = vld [vmem:[#allocation7 + $0x230] sm:$0xff]
    %v298 = vld [vmem:[#allocation7 + $0x238] sm:$0xff]
    %v299 = vld [vmem:[#allocation7 + $0x240] sm:$0xff]
    %v300 = vld [vmem:[#allocation7 + $0x248] sm:$0xff]
    %v301 = vld [vmem:[#allocation7 + $0x250] sm:$0xff]
    %v302 = vld [vmem:[#allocation7 + $0x258] sm:$0xff]
    %v303 = vld [vmem:[#allocation7 + $0x260] sm:$0xff]
    %v304 = vld [vmem:[#allocation7 + $0x268] sm:$0xff]
    %v305 = vld [vmem:[#allocation7 + $0x270] sm:$0xff]
    %v306 = vld [vmem:[#allocation7 + $0x278] sm:$0xff]
    %v307 = vld [vmem:[#allocation7 + $0x280] sm:$0xff]
    %v308 = vld [vmem:[#allocation7 + $0x288] sm:$0xff]
    %v309 = vld [vmem:[#allocation7 + $0x290] sm:$0xff]
    %v310 = vld [vmem:[#allocation7 + $0x298] sm:$0xff]
    %v311 = vld [vmem:[#allocation7 + $0x2a0] sm:$0xff]
    %v312 = vld [vmem:[#allocation7 + $0x2a8] sm:$0xff]
    %v313 = vld [vmem:[#allocation7 + $0x2b0] sm:$0xff]
    %v314 = vld [vmem:[#allocation7 + $0x2b8] sm:$0xff]
    %v315 = vld [vmem:[#allocation7 + $0x2c0] sm:$0xff]
    %v316 = vld [vmem:[#allocation7 + $0x2c8] sm:$0xff]
    %v317 = vld [vmem:[#allocation7 + $0x2d0] sm:$0xff]
    %v318 = vld [vmem:[#allocation7 + $0x2d8] sm:$0xff]
    %v319 = vld [vmem:[#allocation7 + $0x2e0] sm:$0xff]
    %v320 = vld [vmem:[#allocation7 + $0x2e8] sm:$0xff]
    %v321 = vld [vmem:[#allocation7 + $0x2f0] sm:$0xff]
    %v322 = vld [vmem:[#allocation7 + $0x2f8] sm:$0xff]
    %v323 = vld [vmem:[#allocation7 + $0x300] sm:$0xff]
    %v324 = vld [vmem:[#allocation7 + $0x308] sm:$0xff]
    %v325 = vld [vmem:[#allocation7 + $0x310] sm:$0xff]
    %v326 = vld [vmem:[#allocation7 + $0x318] sm:$0xff]
    %v327 = vld [vmem:[#allocation7 + $0x320] sm:$0xff]
    %v328 = vld [vmem:[#allocation7 + $0x328] sm:$0xff]
    %v329 = vld [vmem:[#allocation7 + $0x330] sm:$0xff]
    %v330 = vld [vmem:[#allocation7 + $0x338] sm:$0xff]
    %v331 = vld [vmem:[#allocation7 + $0x340] sm:$0xff]
    %v332 = vld [vmem:[#allocation7 + $0x348] sm:$0xff]
    %v333 = vld [vmem:[#allocation7 + $0x350] sm:$0xff]
    %v334 = vld [vmem:[#allocation7 + $0x358] sm:$0xff]
    %v335 = vld [vmem:[#allocation7 + $0x360] sm:$0xff]
    %v336 = vld [vmem:[#allocation7 + $0x368] sm:$0xff]
    %v337 = vld [vmem:[#allocation7 + $0x370] sm:$0xff]
    %v338 = vld [vmem:[#allocation7 + $0x378] sm:$0xff]
    %v339 = vld [vmem:[#allocation7 + $0x380] sm:$0xff]
    %v340 = vld [vmem:[#allocation7 + $0x388] sm:$0xff]
    %v341 = vld [vmem:[#allocation7 + $0x390] sm:$0xff]
    %v342 = vld [vmem:[#allocation7 + $0x398] sm:$0xff]
    %v343 = vld [vmem:[#allocation7 + $0x3a0] sm:$0xff]
    %v344 = vld [vmem:[#allocation7 + $0x3a8] sm:$0xff]
    %v345 = vld [vmem:[#allocation7 + $0x3b0] sm:$0xff]
    %v346 = vld [vmem:[#allocation7 + $0x3b8] sm:$0xff]
    %v347 = vld [vmem:[#allocation7 + $0x3c0] sm:$0xff]
    %v348 = vld [vmem:[#allocation7 + $0x3c8] sm:$0xff]
    %v349 = vld [vmem:[#allocation7 + $0x3d0] sm:$0xff]
    %v350 = vld [vmem:[#allocation7 + $0x3d8] sm:$0xff]
    %v351 = vld [vmem:[#allocation7 + $0x3e0] sm:$0xff]
    %v352 = vld [vmem:[#allocation7 + $0x3e8] sm:$0xff]
    %v353 = vld [vmem:[#allocation7 + $0x3f0] sm:$0xff]
    %v354 = vld [vmem:[#allocation7 + $0x3f8] sm:$0xff]
    %v355 = vld [vmem:[%s4] sm:$0xf]
    %v357 = vlaneseq
    %v358 = vshrl.u32 %v357, 7
    %v359 = vsub.s32 0, %v358
    %v360 = vrot.slane %v355, %v359
    %v361 = vlaneseq
    %v362 = vshrl.u32 %v361, 7
    %v363 = vsub.s32 1, %v362
    %v364 = vrot.slane %v355, %v363
    %v365 = vlaneseq
    %v366 = vshrl.u32 %v365, 7
    %v367 = vsub.s32 2, %v366
    %v368 = vrot.slane %v355, %v367
    %v369 = vlaneseq
    %v370 = vshrl.u32 %v369, 7
    %v371 = vsub.s32 3, %v370
    %v372 = vrot.slane %v355, %v371
    %v505 = vunpack.c.l.b16 %v227
    %v506 = vunpack.c.h.b16 %v227
    %v507 = vunpack.c.l.b16 %v228
    %v508 = vunpack.c.h.b16 %v228
    %v509 = vunpack.c.l.b16 %v229
    %v510 = vunpack.c.h.b16 %v229
    %v511 = vunpack.c.l.b16 %v230
    %v512 = vunpack.c.h.b16 %v230
    %v513 = vunpack.c.l.b16 %v231
    %v514 = vunpack.c.h.b16 %v231
    %v515 = vunpack.c.l.b16 %v232
    %v516 = vunpack.c.h.b16 %v232
    %v517 = vunpack.c.l.b16 %v233
    %v518 = vunpack.c.h.b16 %v233
    %v519 = vunpack.c.l.b16 %v234
    %v520 = vunpack.c.h.b16 %v234
    %v521 = vunpack.c.l.b16 %v235
    %v522 = vunpack.c.h.b16 %v235
    %v523 = vunpack.c.l.b16 %v236
    %v524 = vunpack.c.h.b16 %v236
    %v525 = vunpack.c.l.b16 %v237
    %v526 = vunpack.c.h.b16 %v237
    %v527 = vunpack.c.l.b16 %v238
    %v528 = vunpack.c.h.b16 %v238
    %v529 = vunpack.c.l.b16 %v239
    %v530 = vunpack.c.h.b16 %v239
    %v531 = vunpack.c.l.b16 %v240
    %v532 = vunpack.c.h.b16 %v240
    %v533 = vunpack.c.l.b16 %v241
    %v534 = vunpack.c.h.b16 %v241
    %v535 = vunpack.c.l.b16 %v242
    %v536 = vunpack.c.h.b16 %v242
    %v537 = vunpack.c.l.b16 %v243
    %v538 = vunpack.c.h.b16 %v243
    %v539 = vunpack.c.l.b16 %v244
    %v540 = vunpack.c.h.b16 %v244
    %v541 = vunpack.c.l.b16 %v245
    %v542 = vunpack.c.h.b16 %v245
    %v543 = vunpack.c.l.b16 %v246
    %v544 = vunpack.c.h.b16 %v246
    %v545 = vunpack.c.l.b16 %v247
    %v546 = vunpack.c.h.b16 %v247
    %v547 = vunpack.c.l.b16 %v248
    %v548 = vunpack.c.h.b16 %v248
    %v549 = vunpack.c.l.b16 %v249
    %v550 = vunpack.c.h.b16 %v249
    %v551 = vunpack.c.l.b16 %v250
    %v552 = vunpack.c.h.b16 %v250
    %v553 = vunpack.c.l.b16 %v251
    %v554 = vunpack.c.h.b16 %v251
    %v555 = vunpack.c.l.b16 %v252
    %v556 = vunpack.c.h.b16 %v252
    %v557 = vunpack.c.l.b16 %v253
    %v558 = vunpack.c.h.b16 %v253
    %v559 = vunpack.c.l.b16 %v254
    %v560 = vunpack.c.h.b16 %v254
    %v561 = vunpack.c.l.b16 %v255
    %v562 = vunpack.c.h.b16 %v255
    %v563 = vunpack.c.l.b16 %v256
    %v564 = vunpack.c.h.b16 %v256
    %v565 = vunpack.c.l.b16 %v257
    %v566 = vunpack.c.h.b16 %v257
    %v567 = vunpack.c.l.b16 %v258
    %v568 = vunpack.c.h.b16 %v258
    %v569 = vunpack.c.l.b16 %v259
    %v570 = vunpack.c.h.b16 %v259
    %v571 = vunpack.c.l.b16 %v260
    %v572 = vunpack.c.h.b16 %v260
    %v573 = vunpack.c.l.b16 %v261
    %v574 = vunpack.c.h.b16 %v261
    %v575 = vunpack.c.l.b16 %v262
    %v576 = vunpack.c.h.b16 %v262
    %v577 = vunpack.c.l.b16 %v263
    %v578 = vunpack.c.h.b16 %v263
    %v579 = vunpack.c.l.b16 %v264
    %v580 = vunpack.c.h.b16 %v264
    %v581 = vunpack.c.l.b16 %v265
    %v582 = vunpack.c.h.b16 %v265
    %v583 = vunpack.c.l.b16 %v266
    %v584 = vunpack.c.h.b16 %v266
    %v585 = vunpack.c.l.b16 %v267
    %v586 = vunpack.c.h.b16 %v267
    %v587 = vunpack.c.l.b16 %v268
    %v588 = vunpack.c.h.b16 %v268
    %v589 = vunpack.c.l.b16 %v269
    %v590 = vunpack.c.h.b16 %v269
    %v591 = vunpack.c.l.b16 %v270
    %v592 = vunpack.c.h.b16 %v270
    %v593 = vunpack.c.l.b16 %v271
    %v594 = vunpack.c.h.b16 %v271
    %v595 = vunpack.c.l.b16 %v272
    %v596 = vunpack.c.h.b16 %v272
    %v597 = vunpack.c.l.b16 %v273
    %v598 = vunpack.c.h.b16 %v273
    %v599 = vunpack.c.l.b16 %v274
    %v600 = vunpack.c.h.b16 %v274
    %v601 = vunpack.c.l.b16 %v275
    %v602 = vunpack.c.h.b16 %v275
    %v603 = vunpack.c.l.b16 %v276
    %v604 = vunpack.c.h.b16 %v276
    %v605 = vunpack.c.l.b16 %v277
    %v606 = vunpack.c.h.b16 %v277
    %v607 = vunpack.c.l.b16 %v278
    %v608 = vunpack.c.h.b16 %v278
    %v609 = vunpack.c.l.b16 %v279
    %v610 = vunpack.c.h.b16 %v279
    %v611 = vunpack.c.l.b16 %v280
    %v612 = vunpack.c.h.b16 %v280
    %v613 = vunpack.c.l.b16 %v281
    %v614 = vunpack.c.h.b16 %v281
    %v615 = vunpack.c.l.b16 %v282
    %v616 = vunpack.c.h.b16 %v282
    %v617 = vunpack.c.l.b16 %v283
    %v618 = vunpack.c.h.b16 %v283
    %v619 = vunpack.c.l.b16 %v284
    %v620 = vunpack.c.h.b16 %v284
    %v621 = vunpack.c.l.b16 %v285
    %v622 = vunpack.c.h.b16 %v285
    %v623 = vunpack.c.l.b16 %v286
    %v624 = vunpack.c.h.b16 %v286
    %v625 = vunpack.c.l.b16 %v287
    %v626 = vunpack.c.h.b16 %v287
    %v627 = vunpack.c.l.b16 %v288
    %v628 = vunpack.c.h.b16 %v288
    %v629 = vunpack.c.l.b16 %v289
    %v630 = vunpack.c.h.b16 %v289
    %v631 = vunpack.c.l.b16 %v290
    %v632 = vunpack.c.h.b16 %v290
    %v633 = vunpack.c.l.b16 %v291
    %v634 = vunpack.c.h.b16 %v291
    %v635 = vunpack.c.l.b16 %v292
    %v636 = vunpack.c.h.b16 %v292
    %v637 = vunpack.c.l.b16 %v293
    %v638 = vunpack.c.h.b16 %v293
    %v639 = vunpack.c.l.b16 %v294
    %v640 = vunpack.c.h.b16 %v294
    %v641 = vunpack.c.l.b16 %v295
    %v642 = vunpack.c.h.b16 %v295
    %v643 = vunpack.c.l.b16 %v296
    %v644 = vunpack.c.h.b16 %v296
    %v645 = vunpack.c.l.b16 %v297
    %v646 = vunpack.c.h.b16 %v297
    %v647 = vunpack.c.l.b16 %v298
    %v648 = vunpack.c.h.b16 %v298
    %v649 = vunpack.c.l.b16 %v299
    %v650 = vunpack.c.h.b16 %v299
    %v651 = vunpack.c.l.b16 %v300
    %v652 = vunpack.c.h.b16 %v300
    %v653 = vunpack.c.l.b16 %v301
    %v654 = vunpack.c.h.b16 %v301
    %v655 = vunpack.c.l.b16 %v302
    %v656 = vunpack.c.h.b16 %v302
    %v657 = vunpack.c.l.b16 %v303
    %v658 = vunpack.c.h.b16 %v303
    %v659 = vunpack.c.l.b16 %v304
    %v660 = vunpack.c.h.b16 %v304
    %v661 = vunpack.c.l.b16 %v305
    %v662 = vunpack.c.h.b16 %v305
    %v663 = vunpack.c.l.b16 %v306
    %v664 = vunpack.c.h.b16 %v306
    %v665 = vunpack.c.l.b16 %v307
    %v666 = vunpack.c.h.b16 %v307
    %v667 = vunpack.c.l.b16 %v308
    %v668 = vunpack.c.h.b16 %v308
    %v669 = vunpack.c.l.b16 %v309
    %v670 = vunpack.c.h.b16 %v309
    %v671 = vunpack.c.l.b16 %v310
    %v672 = vunpack.c.h.b16 %v310
    %v673 = vunpack.c.l.b16 %v311
    %v674 = vunpack.c.h.b16 %v311
    %v675 = vunpack.c.l.b16 %v312
    %v676 = vunpack.c.h.b16 %v312
    %v677 = vunpack.c.l.b16 %v313
    %v678 = vunpack.c.h.b16 %v313
    %v679 = vunpack.c.l.b16 %v314
    %v680 = vunpack.c.h.b16 %v314
    %v681 = vunpack.c.l.b16 %v315
    %v682 = vunpack.c.h.b16 %v315
    %v683 = vunpack.c.l.b16 %v316
    %v684 = vunpack.c.h.b16 %v316
    %v685 = vunpack.c.l.b16 %v317
    %v686 = vunpack.c.h.b16 %v317
    %v687 = vunpack.c.l.b16 %v318
    %v688 = vunpack.c.h.b16 %v318
    %v689 = vunpack.c.l.b16 %v319
    %v690 = vunpack.c.h.b16 %v319
    %v691 = vunpack.c.l.b16 %v320
    %v692 = vunpack.c.h.b16 %v320
    %v693 = vunpack.c.l.b16 %v321
    %v694 = vunpack.c.h.b16 %v321
    %v695 = vunpack.c.l.b16 %v322
    %v696 = vunpack.c.h.b16 %v322
    %v697 = vunpack.c.l.b16 %v323
    %v698 = vunpack.c.h.b16 %v323
    %v699 = vunpack.c.l.b16 %v324
    %v700 = vunpack.c.h.b16 %v324
    %v701 = vunpack.c.l.b16 %v325
    %v702 = vunpack.c.h.b16 %v325
    %v703 = vunpack.c.l.b16 %v326
    %v704 = vunpack.c.h.b16 %v326
    %v705 = vunpack.c.l.b16 %v327
    %v706 = vunpack.c.h.b16 %v327
    %v707 = vunpack.c.l.b16 %v328
    %v708 = vunpack.c.h.b16 %v328
    %v709 = vunpack.c.l.b16 %v329
    %v710 = vunpack.c.h.b16 %v329
    %v711 = vunpack.c.l.b16 %v330
    %v712 = vunpack.c.h.b16 %v330
    %v713 = vunpack.c.l.b16 %v331
    %v714 = vunpack.c.h.b16 %v331
    %v715 = vunpack.c.l.b16 %v332
    %v716 = vunpack.c.h.b16 %v332
    %v717 = vunpack.c.l.b16 %v333
    %v718 = vunpack.c.h.b16 %v333
    %v719 = vunpack.c.l.b16 %v334
    %v720 = vunpack.c.h.b16 %v334
    %v721 = vunpack.c.l.b16 %v335
    %v722 = vunpack.c.h.b16 %v335
    %v723 = vunpack.c.l.b16 %v336
    %v724 = vunpack.c.h.b16 %v336
    %v725 = vunpack.c.l.b16 %v337
    %v726 = vunpack.c.h.b16 %v337
    %v727 = vunpack.c.l.b16 %v338
    %v728 = vunpack.c.h.b16 %v338
    %v729 = vunpack.c.l.b16 %v339
    %v730 = vunpack.c.h.b16 %v339
    %v731 = vunpack.c.l.b16 %v340
    %v732 = vunpack.c.h.b16 %v340
    %v733 = vunpack.c.l.b16 %v341
    %v734 = vunpack.c.h.b16 %v341
    %v735 = vunpack.c.l.b16 %v342
    %v736 = vunpack.c.h.b16 %v342
    %v737 = vunpack.c.l.b16 %v343
    %v738 = vunpack.c.h.b16 %v343
    %v739 = vunpack.c.l.b16 %v344
    %v740 = vunpack.c.h.b16 %v344
    %v741 = vunpack.c.l.b16 %v345
    %v742 = vunpack.c.h.b16 %v345
    %v743 = vunpack.c.l.b16 %v346
    %v744 = vunpack.c.h.b16 %v346
    %v745 = vunpack.c.l.b16 %v347
    %v746 = vunpack.c.h.b16 %v347
    %v747 = vunpack.c.l.b16 %v348
    %v748 = vunpack.c.h.b16 %v348
    %v749 = vunpack.c.l.b16 %v349
    %v750 = vunpack.c.h.b16 %v349
    %v751 = vunpack.c.l.b16 %v350
    %v752 = vunpack.c.h.b16 %v350
    %v753 = vunpack.c.l.b16 %v351
    %v754 = vunpack.c.h.b16 %v351
    %v755 = vunpack.c.l.b16 %v352
    %v756 = vunpack.c.h.b16 %v352
    %v757 = vunpack.c.l.b16 %v353
    %v758 = vunpack.c.h.b16 %v353
    %v759 = vunpack.c.l.b16 %v354
    %v760 = vunpack.c.h.b16 %v354
    %v761 = vpack.c.b16 %v509, %v505
    %v762 = vpack.c.b16 %v510, %v506
    %v763 = vpack.c.b16 %v511, %v507
    %v764 = vpack.c.b16 %v512, %v508
    %v765 = vpack.c.b16 %v517, %v513
    %v766 = vpack.c.b16 %v518, %v514
    %v767 = vpack.c.b16 %v519, %v515
    %v768 = vpack.c.b16 %v520, %v516
    %v769 = vpack.c.b16 %v525, %v521
    %v770 = vpack.c.b16 %v526, %v522
    %v771 = vpack.c.b16 %v527, %v523
    %v772 = vpack.c.b16 %v528, %v524
    %v773 = vpack.c.b16 %v533, %v529
    %v774 = vpack.c.b16 %v534, %v530
    %v775 = vpack.c.b16 %v535, %v531
    %v776 = vpack.c.b16 %v536, %v532
    %v777 = vpack.c.b16 %v541, %v537
    %v778 = vpack.c.b16 %v542, %v538
    %v779 = vpack.c.b16 %v543, %v539
    %v780 = vpack.c.b16 %v544, %v540
    %v781 = vpack.c.b16 %v549, %v545
    %v782 = vpack.c.b16 %v550, %v546
    %v783 = vpack.c.b16 %v551, %v547
    %v784 = vpack.c.b16 %v552, %v548
    %v785 = vpack.c.b16 %v557, %v553
    %v786 = vpack.c.b16 %v558, %v554
    %v787 = vpack.c.b16 %v559, %v555
    %v788 = vpack.c.b16 %v560, %v556
    %v789 = vpack.c.b16 %v565, %v561
    %v790 = vpack.c.b16 %v566, %v562
    %v791 = vpack.c.b16 %v567, %v563
    %v792 = vpack.c.b16 %v568, %v564
    %v793 = vpack.c.b16 %v573, %v569
    %v794 = vpack.c.b16 %v574, %v570
    %v795 = vpack.c.b16 %v575, %v571
    %v796 = vpack.c.b16 %v576, %v572
    %v797 = vpack.c.b16 %v581, %v577
    %v798 = vpack.c.b16 %v582, %v578
    %v799 = vpack.c.b16 %v583, %v579
    %v800 = vpack.c.b16 %v584, %v580
    %v801 = vpack.c.b16 %v589, %v585
    %v802 = vpack.c.b16 %v590, %v586
    %v803 = vpack.c.b16 %v591, %v587
    %v804 = vpack.c.b16 %v592, %v588
    %v805 = vpack.c.b16 %v597, %v593
    %v806 = vpack.c.b16 %v598, %v594
    %v807 = vpack.c.b16 %v599, %v595
    %v808 = vpack.c.b16 %v600, %v596
    %v809 = vpack.c.b16 %v605, %v601
    %v810 = vpack.c.b16 %v606, %v602
    %v811 = vpack.c.b16 %v607, %v603
    %v812 = vpack.c.b16 %v608, %v604
    %v813 = vpack.c.b16 %v613, %v609
    %v814 = vpack.c.b16 %v614, %v610
    %v815 = vpack.c.b16 %v615, %v611
    %v816 = vpack.c.b16 %v616, %v612
    %v817 = vpack.c.b16 %v621, %v617
    %v818 = vpack.c.b16 %v622, %v618
    %v819 = vpack.c.b16 %v623, %v619
    %v820 = vpack.c.b16 %v624, %v620
    %v821 = vpack.c.b16 %v629, %v625
    %v822 = vpack.c.b16 %v630, %v626
    %v823 = vpack.c.b16 %v631, %v627
    %v824 = vpack.c.b16 %v632, %v628
    %v825 = vpack.c.b16 %v637, %v633
    %v826 = vpack.c.b16 %v638, %v634
    %v827 = vpack.c.b16 %v639, %v635
    %v828 = vpack.c.b16 %v640, %v636
    %v829 = vpack.c.b16 %v645, %v641
    %v830 = vpack.c.b16 %v646, %v642
    %v831 = vpack.c.b16 %v647, %v643
    %v832 = vpack.c.b16 %v648, %v644
    %v833 = vpack.c.b16 %v653, %v649
    %v834 = vpack.c.b16 %v654, %v650
    %v835 = vpack.c.b16 %v655, %v651
    %v836 = vpack.c.b16 %v656, %v652
    %v837 = vpack.c.b16 %v661, %v657
    %v838 = vpack.c.b16 %v662, %v658
    %v839 = vpack.c.b16 %v663, %v659
    %v840 = vpack.c.b16 %v664, %v660
    %v841 = vpack.c.b16 %v669, %v665
    %v842 = vpack.c.b16 %v670, %v666
    %v843 = vpack.c.b16 %v671, %v667
    %v844 = vpack.c.b16 %v672, %v668
    %v845 = vpack.c.b16 %v677, %v673
    %v846 = vpack.c.b16 %v678, %v674
    %v847 = vpack.c.b16 %v679, %v675
    %v848 = vpack.c.b16 %v680, %v676
    %v849 = vpack.c.b16 %v685, %v681
    %v850 = vpack.c.b16 %v686, %v682
    %v851 = vpack.c.b16 %v687, %v683
    %v852 = vpack.c.b16 %v688, %v684
    %v853 = vpack.c.b16 %v693, %v689
    %v854 = vpack.c.b16 %v694, %v690
    %v855 = vpack.c.b16 %v695, %v691
    %v856 = vpack.c.b16 %v696, %v692
    %v857 = vpack.c.b16 %v701, %v697
    %v858 = vpack.c.b16 %v702, %v698
    %v859 = vpack.c.b16 %v703, %v699
    %v860 = vpack.c.b16 %v704, %v700
    %v861 = vpack.c.b16 %v709, %v705
    %v862 = vpack.c.b16 %v710, %v706
    %v863 = vpack.c.b16 %v711, %v707
    %v864 = vpack.c.b16 %v712, %v708
    %v865 = vpack.c.b16 %v717, %v713
    %v866 = vpack.c.b16 %v718, %v714
    %v867 = vpack.c.b16 %v719, %v715
    %v868 = vpack.c.b16 %v720, %v716
    %v869 = vpack.c.b16 %v725, %v721
    %v870 = vpack.c.b16 %v726, %v722
    %v871 = vpack.c.b16 %v727, %v723
    %v872 = vpack.c.b16 %v728, %v724
    %v873 = vpack.c.b16 %v733, %v729
    %v874 = vpack.c.b16 %v734, %v730
    %v875 = vpack.c.b16 %v735, %v731
    %v876 = vpack.c.b16 %v736, %v732
    %v877 = vpack.c.b16 %v741, %v737
    %v878 = vpack.c.b16 %v742, %v738
    %v879 = vpack.c.b16 %v743, %v739
    %v880 = vpack.c.b16 %v744, %v740
    %v881 = vpack.c.b16 %v749, %v745
    %v882 = vpack.c.b16 %v750, %v746
    %v883 = vpack.c.b16 %v751, %v747
    %v884 = vpack.c.b16 %v752, %v748
    %v885 = vpack.c.b16 %v757, %v753
    %v886 = vpack.c.b16 %v758, %v754
    %v887 = vpack.c.b16 %v759, %v755
    %v888 = vpack.c.b16 %v760, %v756
    %1017 = vmatprep.subr.bf16.mxu0 %v762
    %1018 = vmatpush1.bf16.msra.mxu0 %v761
    %1019 = vmatprep.subr.bf16.mxu0 %v766
    %1020 = vmatpush1.bf16.msra.mxu0 %v765
    %1021 = vmatprep.subr.bf16.mxu0 %v770
    %1022 = vmatpush1.bf16.msra.mxu0 %v769
    %1023 = vmatprep.subr.bf16.mxu0 %v774
    %1024 = vmatpush1.bf16.msra.mxu0 %v773
    %1025 = vmatprep.subr.bf16.mxu0 %v778
    %1026 = vmatpush1.bf16.msra.mxu0 %v777
    %1027 = vmatprep.subr.bf16.mxu0 %v782
    %1028 = vmatpush1.bf16.msra.mxu0 %v781
    %1029 = vmatprep.subr.bf16.mxu0 %v786
    %1030 = vmatpush1.bf16.msra.mxu0 %v785
    %1031 = vmatprep.subr.bf16.mxu0 %v790
    %1032 = vmatpush1.bf16.msra.mxu0 %v789
    %1033 = vmatprep.subr.bf16.mxu0 %v794
    %1034 = vmatpush1.bf16.msra.mxu0 %v793
    %1035 = vmatprep.subr.bf16.mxu0 %v798
    %1036 = vmatpush1.bf16.msra.mxu0 %v797
    %1037 = vmatprep.subr.bf16.mxu0 %v802
    %1038 = vmatpush1.bf16.msra.mxu0 %v801
    %1039 = vmatprep.subr.bf16.mxu0 %v806
    %1040 = vmatpush1.bf16.msra.mxu0 %v805
    %1041 = vmatprep.subr.bf16.mxu0 %v810
    %1042 = vmatpush1.bf16.msra.mxu0 %v809
    %1043 = vmatprep.subr.bf16.mxu0 %v814
    %1044 = vmatpush1.bf16.msra.mxu0 %v813
    %1045 = vmatprep.subr.bf16.mxu0 %v818
    %1046 = vmatpush1.bf16.msra.mxu0 %v817
    %1047 = vmatprep.subr.bf16.mxu0 %v822
    %1048 = vmatpush1.bf16.msra.mxu0 %v821
    %1049 = vmatprep.mubr.bf16.mxu0 %v224
    %1050 = vmatmul.mubr.bf16.gmra.mrb[0].mxu0 %v223
    %v1051 = vpop.f32.mrb[0].mxu0
    %v1052 = vadd.f32 %v360, %v1051
    %v1053 = vpop.f32.mrb[0].mxu0
    %v1054 = vadd.f32 %v364, %v1053
    %v1055 = vpop.f32.mrb[0].mxu0
    %v1056 = vpop.f32.mrb[0].mxu0
    %1057 = vdwg.mxu0
    %1058 = vmatprep.subr.bf16.mxu0 %v826
    %1059 = vmatpush1.bf16.msra.mxu0 %v825
    %1060 = vmatprep.subr.bf16.mxu0 %v830
    %1061 = vmatpush1.bf16.msra.mxu0 %v829
    %1062 = vmatprep.subr.bf16.mxu0 %v834
    %1063 = vmatpush1.bf16.msra.mxu0 %v833
    %1064 = vmatprep.subr.bf16.mxu0 %v838
    %1065 = vmatpush1.bf16.msra.mxu0 %v837
    %1066 = vmatprep.subr.bf16.mxu0 %v842
    %1067 = vmatpush1.bf16.msra.mxu0 %v841
    %1068 = vmatprep.subr.bf16.mxu0 %v846
    %1069 = vmatpush1.bf16.msra.mxu0 %v845
    %1070 = vmatprep.subr.bf16.mxu0 %v850
    %1071 = vmatpush1.bf16.msra.mxu0 %v849
    %1072 = vmatprep.subr.bf16.mxu0 %v854
    %1073 = vmatpush1.bf16.msra.mxu0 %v853
    %1074 = vmatprep.subr.bf16.mxu0 %v858
    %1075 = vmatpush1.bf16.msra.mxu0 %v857
    %1076 = vmatprep.subr.bf16.mxu0 %v862
    %1077 = vmatpush1.bf16.msra.mxu0 %v861
    %1078 = vmatprep.subr.bf16.mxu0 %v866
    %1079 = vmatpush1.bf16.msra.mxu0 %v865
    %1080 = vmatprep.subr.bf16.mxu0 %v870
    %1081 = vmatpush1.bf16.msra.mxu0 %v869
    %1082 = vmatprep.subr.bf16.mxu0 %v874
    %1083 = vmatpush1.bf16.msra.mxu0 %v873
    %1084 = vmatprep.subr.bf16.mxu0 %v878
    %1085 = vmatpush1.bf16.msra.mxu0 %v877
    %1086 = vmatprep.subr.bf16.mxu0 %v882
    %1087 = vmatpush1.bf16.msra.mxu0 %v881
    %1088 = vmatprep.subr.bf16.mxu0 %v886
    %1089 = vmatpush1.bf16.msra.mxu0 %v885
    %1090 = vmatprep.mubr.bf16.mxu0 %v226
    %1091 = vmatmul.mubr.bf16.gmra.mrb[0].mxu0 %v225
    %v1092 = vpop.f32.mrb[0].mxu0
    %v1093 = vadd.f32 %v1052, %v1092
    %v1094 = vpop.f32.mrb[0].mxu0
    %v1095 = vadd.f32 %v1054, %v1094
    %v1096 = vpop.f32.mrb[0].mxu0
    %v1097 = vpop.f32.mrb[0].mxu0
    %1098 = vdwg.mxu0
    %1099 = vmatprep.subr.bf16.mxu0 %v764
    %1100 = vmatpush1.bf16.msra.mxu0 %v763
    %1101 = vmatprep.subr.bf16.mxu0 %v768
    %1102 = vmatpush1.bf16.msra.mxu0 %v767
    %1103 = vmatprep.subr.bf16.mxu0 %v772
    %1104 = vmatpush1.bf16.msra.mxu0 %v771
    %1105 = vmatprep.subr.bf16.mxu0 %v776
    %1106 = vmatpush1.bf16.msra.mxu0 %v775
    %1107 = vmatprep.subr.bf16.mxu0 %v780
    %1108 = vmatpush1.bf16.msra.mxu0 %v779
    %1109 = vmatprep.subr.bf16.mxu0 %v784
    %1110 = vmatpush1.bf16.msra.mxu0 %v783
    %1111 = vmatprep.subr.bf16.mxu0 %v788
    %1112 = vmatpush1.bf16.msra.mxu0 %v787
    %1113 = vmatprep.subr.bf16.mxu0 %v792
    %1114 = vmatpush1.bf16.msra.mxu0 %v791
    %1115 = vmatprep.subr.bf16.mxu0 %v796
    %1116 = vmatpush1.bf16.msra.mxu0 %v795
    %1117 = vmatprep.subr.bf16.mxu0 %v800
    %1118 = vmatpush1.bf16.msra.mxu0 %v799
    %1119 = vmatprep.subr.bf16.mxu0 %v804
    %1120 = vmatpush1.bf16.msra.mxu0 %v803
    %1121 = vmatprep.subr.bf16.mxu0 %v808
    %1122 = vmatpush1.bf16.msra.mxu0 %v807
    %1123 = vmatprep.subr.bf16.mxu0 %v812
    %1124 = vmatpush1.bf16.msra.mxu0 %v811
    %1125 = vmatprep.subr.bf16.mxu0 %v816
    %1126 = vmatpush1.bf16.msra.mxu0 %v815
    %1127 = vmatprep.subr.bf16.mxu0 %v820
    %1128 = vmatpush1.bf16.msra.mxu0 %v819
    %1129 = vmatprep.subr.bf16.mxu0 %v824
    %1130 = vmatpush1.bf16.msra.mxu0 %v823
    %1131 = vmatprep.mubr.bf16.mxu0 %v224
    %1132 = vmatmul.mubr.bf16.gmra.mrb[0].mxu0 %v223
    %v1133 = vpop.f32.mrb[0].mxu0
    %v1134 = vadd.f32 %v368, %v1133
    %v1135 = vpop.f32.mrb[0].mxu0
    %v1136 = vadd.f32 %v372, %v1135
    %v1137 = vpop.f32.mrb[0].mxu0
    %v1138 = vpop.f32.mrb[0].mxu0
    %1139 = vdwg.mxu0
    %1140 = vmatprep.subr.bf16.mxu0 %v828
    %1141 = vmatpush1.bf16.msra.mxu0 %v827
    %1142 = vmatprep.subr.bf16.mxu0 %v832
    %1143 = vmatpush1.bf16.msra.mxu0 %v831
    %1144 = vmatprep.subr.bf16.mxu0 %v836
    %1145 = vmatpush1.bf16.msra.mxu0 %v835
    %1146 = vmatprep.subr.bf16.mxu0 %v840
    %1147 = vmatpush1.bf16.msra.mxu0 %v839
    %1148 = vmatprep.subr.bf16.mxu0 %v844
    %1149 = vmatpush1.bf16.msra.mxu0 %v843
    %1150 = vmatprep.subr.bf16.mxu0 %v848
    %1151 = vmatpush1.bf16.msra.mxu0 %v847
    %1152 = vmatprep.subr.bf16.mxu0 %v852
    %1153 = vmatpush1.bf16.msra.mxu0 %v851
    %1154 = vmatprep.subr.bf16.mxu0 %v856
    %1155 = vmatpush1.bf16.msra.mxu0 %v855
    %1156 = vmatprep.subr.bf16.mxu0 %v860
    %1157 = vmatpush1.bf16.msra.mxu0 %v859
    %1158 = vmatprep.subr.bf16.mxu0 %v864
    %1159 = vmatpush1.bf16.msra.mxu0 %v863
    %1160 = vmatprep.subr.bf16.mxu0 %v868
    %1161 = vmatpush1.bf16.msra.mxu0 %v867
    %1162 = vmatprep.subr.bf16.mxu0 %v872
    %1163 = vmatpush1.bf16.msra.mxu0 %v871
    %1164 = vmatprep.subr.bf16.mxu0 %v876
    %1165 = vmatpush1.bf16.msra.mxu0 %v875
    %1166 = vmatprep.subr.bf16.mxu0 %v880
    %1167 = vmatpush1.bf16.msra.mxu0 %v879
    %1168 = vmatprep.subr.bf16.mxu0 %v884
    %1169 = vmatpush1.bf16.msra.mxu0 %v883
    %1170 = vmatprep.subr.bf16.mxu0 %v888
    %1171 = vmatpush1.bf16.msra.mxu0 %v887
    %1172 = vmatprep.mubr.bf16.mxu0 %v226
    %1173 = vmatmul.mubr.bf16.gmra.mrb[0].mxu0 %v225
    %v1174 = vpop.f32.mrb[0].mxu0
    %v1175 = vadd.f32 %v1134, %v1174
    %v1176 = vpop.f32.mrb[0].mxu0
    %v1177 = vadd.f32 %v1136, %v1176
    %v1178 = vpop.f32.mrb[0].mxu0
    %v1179 = vpop.f32.mrb[0].mxu0
    %1180 = vdwg.mxu0
    %1181 = vst [vmem:[#allocation8] sm:$0xff] %v1093
    %1182 = vst [vmem:[#allocation8 + $0x8] sm:$0xff] %v1095
    %1183 = vst [vmem:[#allocation8 + $0x10] sm:$0xff] %v1175
    %1184 = vst [vmem:[#allocation8 + $0x18] sm:$0xff] %v1177
    // Predicated region
    $region34: #{tpu_custom_call.1} parent=1 // pred_check
      _
    $region35: #{tpu_custom_call.1} parent=1 // pred_check_branch
      %1186 = sbr.rel (0) target = $region37
    $region36: #{tpu_custom_call.1} parent=1 // pred_region
      %s1188 = ssub.s32 512, 512
      %1189 = vsyncadd [#allocation4], %s1188
      %s1191 = sshll.u32 [#allocation8], 4
      %s1192 = int_to_ptr.vmem [resolvable:$true] %s1191
      %1194 = dma.vmem_to_hbm [thread:$0]  %s1192, 512, %s5, [#allocation4]
    $region37: #{tpu_custom_call.1} parent=1 // pred_fallthru
      _
    // Predicated region
    $region38: #{tpu_custom_call.1} parent=1 // pred_check
      _
    $region39: #{tpu_custom_call.1} parent=1 // pred_check_branch
      %1196 = sbr.rel (0) target = $region41
    $region40: #{tpu_custom_call.1} parent=1 // pred_region
      %1197 = dma.done [#allocation4], 512
    $region41: #{tpu_custom_call.1} parent=1 // pred_fallthru
      _
    %1198 = vsyncpa [#allocation3], 1
    %1199 = vsyncpa [#allocation6], 1
    %1200 = vsyncpa [#allocation4], 1

</llo_original>
